<compile_context>
chip_gen: v6e
topology: v6e:2x2x1
jax: 0.10.0
libtpu: 0.0.40
codegen_flags: <defaults>
</compile_context>

<pallas_src>
import math
import functools

import jax
import jax.numpy as jnp
from jax.experimental import pallas as pl
from jax.experimental.pallas import tpu as pltpu

_LANE = 128


# ----------------------------------------------------------------------------
# Kernel
# ----------------------------------------------------------------------------
def _head_kernel(x_ref,
                 w_pool_ref, b_pool_ref,
                 w1_ref, b1_ref,
                 gamma_ref, beta_ref,
                 w2_ref, b2_ref,
                 out_ref):
    """Fused pooler(tanh) -> proj1 -> LayerNorm -> GELU(erf) -> proj2.

    x_ref:      [bt, H]   f32   CLS hidden states for this batch tile
    w_pool_ref: [H, H]    bf16
    b_pool_ref: [1, H]    f32
    w1_ref:     [H, 2H]   bf16
    b1_ref:     [1, 2H]   f32
    gamma_ref:  [1, 2H]   f32
    beta_ref:   [1, 2H]   f32
    w2_ref:     [2H, Cp]  bf16   (Cp = num_classes padded to a lane multiple)
    b2_ref:     [1, Cp]   f32
    out_ref:    [bt, Cp]  f32
    """
    # Activations go to bf16 only right before each MXU op.
    x = x_ref[...].astype(jnp.bfloat16)

    # pooler_dense + tanh
    h = jnp.dot(x, w_pool_ref[...], preferred_element_type=jnp.float32)
    h = jnp.tanh(h + b_pool_ref[...])

    # head_proj1
    h = jnp.dot(h.astype(jnp.bfloat16), w1_ref[...],
                preferred_element_type=jnp.float32) + b1_ref[...]

    # LayerNorm over the last dim (2H), eps=1e-5 (nn.LayerNorm, biased var).
    # One-pass variance (E[h^2] - mu^2): both reductions depend only on h, so
    # there is a single elementwise pass feeding the XLU; gamma folds into
    # inv_std so the applied form is (h - mu) * (inv_std*gamma) + beta.
    inv_n = 1.0 / float(h.shape[-1])
    mu = jnp.sum(h, axis=-1, keepdims=True) * inv_n
    ex2 = jnp.sum(h * h, axis=-1, keepdims=True) * inv_n
    inv_std = jax.lax.rsqrt(ex2 - mu * mu + 1e-5)
    h = (h - mu) * (inv_std * gamma_ref[...]) + beta_ref[...]

    # GELU, exact erf form (PyTorch nn.GELU default — kept for parity).
    # TODO(synk): tanh-GELU would move the transcendental to the EUP slot
    # (co-issues for free), but changes numerics vs exact-erf nn.GELU.
    h = 0.5 * h * (1.0 + jax.lax.erf(h * (1.0 / math.sqrt(2.0))))

    # head_proj2 (lane-dense padded output; padding sliced off in the wrapper).
    out = jnp.dot(h.astype(jnp.bfloat16), w2_ref[...],
                  preferred_element_type=jnp.float32) + b2_ref[...]
    out_ref[...] = out.astype(out_ref.dtype)


# ----------------------------------------------------------------------------
# Hardware / tiling heuristics
# ----------------------------------------------------------------------------
def _round_up(x, m):
    return (x + m - 1) // m * m


def _device_kind():
    try:
        return jax.devices()[0].device_kind.lower()
    except Exception:
        return ""


def _vmem_cap_bytes(kind):
    """Usable scoped-VMEM cap for this chip."""
    try:
        phys = int(pltpu.get_tpu_info().vmem_capacity_bytes)
    except Exception:
        phys = (64 << 20) if "v7" in kind else (128 << 20)
    # v7x (64 MiB physical): use all of it; 128 MiB chips: leave headroom.
    return phys if phys <= (64 << 20) else phys - (24 << 20)


def _batch_tile(batch, kind):
    """Generation-aware batch tile.

    v5e: M=128 already fills its 4x128x128 MXU and halves the live [bt,2H]
    f32 intermediates (its single vector-store slot is the likely bottleneck).
    Others: up to 256.  For B > tile, pick a multiple-of-8 divisor so the
    batch grid has >=2 steps (megacore sharding on v7x, DMA/compute overlap
    elsewhere).  Small batches stay one tile (weight-DMA bound; splitting
    would only duplicate the per-core weight DMA).
    """
    pref = 128 if "v5" in kind else 256
    if batch <= pref:
        return batch
    t = pref
    while t >= 8:
        if batch % t == 0:
            return t
        t -= 8
    return batch  # no aligned divisor: single full-batch tile (always legal)


# ----------------------------------------------------------------------------
# Parameter preparation
# ----------------------------------------------------------------------------
def prepare_params(raw):
    """One-time conversion of f32 [in, out] params into the kernel layout:
    bf16 matmul weights, classifier dim padded lane-dense (zeros in the pad
    columns so the padded logits equal the bias pad and the wrapper slice is
    exact)."""
    kind = _device_kind()
    c = raw["w2"].shape[1]
    # v6e/v7x MXUs are 256 wide: pad large label spaces to 256; else 128.
    lane = 256 if (c >= 256 and "v5" not in kind) else _LANE
    cp = _round_up(max(c, _LANE), lane)
    pad_n = cp - c
    return {
        "w_pool": raw["w_pool"].astype(jnp.bfloat16),
        "b_pool": raw["b_pool"].astype(jnp.float32),
        "w1":     raw["w1"].astype(jnp.bfloat16),
        "b1":     raw["b1"].astype(jnp.float32),
        "gamma":  raw["gamma"].astype(jnp.float32),
        "beta":   raw["beta"].astype(jnp.float32),
        "w2":     jnp.pad(raw["w2"], ((0, 0), (0, pad_n))).astype(jnp.bfloat16),
        "b2":     jnp.pad(raw["b2"], ((0, 0), (0, pad_n))).astype(jnp.float32),
    }


# ----------------------------------------------------------------------------
# Forward wrapper
# ----------------------------------------------------------------------------
@functools.partial(jax.jit, static_argnames=("num_classes",))
def multilabel_head_forward(hidden_states, params, *, num_classes):
    """hidden_states: [B, S, H] float32.  Returns logits [B, num_classes] f32."""
    B, S, H = hidden_states.shape
    Cp = params["w2"].shape[1]
    kind = _device_kind()
    bt = _batch_tile(B, kind)
    n_bt = B // bt

    # Fuse the CLS slice into the kernel when H is lane-aligned: view the input
    # as [B, S*H] (free reshape) and let the BlockSpec pick the first H lanes of
    # each row, i.e. hidden_states[:, 0, :].  Otherwise fall back to a tiny
    # wrapper slice so all block shapes respect the (8,128) rule.
    if H % _LANE == 0:
        x_in = hidden_states.reshape(B, S * H)
    else:
        x_in = hidden_states[:, 0, :]

    x_spec = pl.BlockSpec((bt, H), lambda b: (b, 0))
    out_spec = pl.BlockSpec((bt, Cp), lambda b: (b, 0))

    # Resident weights/biases: constant index_map blocks are fetched once and
    # never re-fetched, so the second pipeline buffer is dead VMEM -> Buffered(1).
    def _resident(shape):
        return pl.BlockSpec(shape, lambda b: (0, 0),
                            pipeline_mode=pl.Buffered(1))

    # Explicit VMEM budget: single-buffered resident weights, double-buffered
    # x/out streams, headroom for the live f32 intermediates, capped at the
    # chip's usable VMEM.
    need = 0
    need += (H * H + H * 2 * H + 2 * H * Cp) * 2      # bf16 weights (x1)
    need += 8 * (H + 3 * (2 * H) + Cp) * 4            # f32 bias/LN rows (sublane-padded)
    need += 2 * bt * H * 4                            # x tile (f32, double-buffered)
    need += 2 * bt * Cp * 4                           # out tile (f32, double-buffered)
    need += 6 * bt * (2 * H) * 4                      # live f32 intermediates headroom
    cap = _vmem_cap_bytes(kind)
    vmem_limit = int(min(cap, max(need + (8 << 20), 32 << 20)))
    # TODO(synk): for very large hidden sizes (resident bf16 weights > cap,
    # e.g. H >~ 4K on v7x) tile w_pool/w1/w2 along K with pltpu.emit_pipeline
    # (or an extra "arbitrary" grid axis + f32 accumulator) while keeping the
    # full [bt, 2H] row in scratch so LayerNorm/GELU stay fused.

    # Advisory cost so XLA overlaps the (first-step, exposed) weight DMA with
    # surrounding ops — matters at small B where the matmuls are microseconds.
    # TODO(synk): for latency-critical inference, prefetch the weights behind
    # the preceding encoder via a cross-pallas_call future (SEMAPHORE + VMEM).
    flops = 2 * B * (3 * H * H + 2 * H * Cp)
    bytes_accessed = (B * H * 4
                      + (H * H + 2 * H * H + 2 * H * Cp) * 2
                      + (H + 6 * H + Cp) * 4
                      + B * Cp * 4)
    cost = pl.CostEstimate(flops=flops,
                           transcendentals=3 * B * H,
                           bytes_accessed=bytes_accessed)

    kernel = pl.pallas_call(
        _head_kernel,
        out_shape=jax.ShapeDtypeStruct((B, Cp), jnp.float32),
        grid_spec=pltpu.PrefetchScalarGridSpec(
            num_scalar_prefetch=0,
            grid=(n_bt,),
            in_specs=[
                x_spec,
                _resident(params["w_pool"].shape),
                _resident(params["b_pool"].shape),
                _resident(params["w1"].shape),
                _resident(params["b1"].shape),
                _resident(params["gamma"].shape),
                _resident(params["beta"].shape),
                _resident(params["w2"].shape),
                _resident(params["b2"].shape),
            ],
            out_specs=out_spec,
        ),
        compiler_params=pltpu.CompilerParams(
            dimension_semantics=("parallel",),
            vmem_limit_bytes=vmem_limit,
        ),
        cost_estimate=cost,
    )
    logits_padded = kernel(
        x_in,
        params["w_pool"], params["b_pool"],
        params["w1"], params["b1"],
        params["gamma"], params["beta"],
        params["w2"], params["b2"],
    )
    return logits_padded[:, :num_classes]


# ----------------------------------------------------------------------------
# Synthetic params + references
# ----------------------------------------------------------------------------
def init_params(key, hidden_dim, num_classes):
    """Deterministic synthetic parameters (PyTorch nn.Linear stores [out, in];
    here we keep [in, out] so the kernel computes x @ W + b directly)."""
    ks = jax.random.split(key, 5)
    H, C = hidden_dim, num_classes
    scale = 0.02
    return {
        "w_pool": scale * jax.random.normal(ks[0], (H, H), jnp.float32),
        "b_pool": jnp.zeros((1, H), jnp.float32),
        "w1":     scale * jax.random.normal(ks[1], (H, 2 * H), jnp.float32),
        "b1":     scale * jax.random.normal(ks[2], (1, 2 * H), jnp.float32),
        "gamma":  jnp.ones((1, 2 * H), jnp.float32),
        "beta":   jnp.zeros((1, 2 * H), jnp.float32),
        "w2":     scale * jax.random.normal(ks[3], (2 * H, C), jnp.float32),
        "b2":     scale * jax.random.normal(ks[4], (1, C), jnp.float32),
    }


def _reference_forward_f32(hidden_states, raw):
    """Pure-JAX f32 reference mirroring the PyTorch forward."""
    x = hidden_states[:, 0, :]
    x = jnp.tanh(x @ raw["w_pool"] + raw["b_pool"])
    x = x @ raw["w1"] + raw["b1"]
    mu = jnp.mean(x, axis=-1, keepdims=True)
    var = jnp.mean((x - mu) ** 2, axis=-1, keepdims=True)
    x = (x - mu) / jnp.sqrt(var + 1e-5) * raw["gamma"] + raw["beta"]
    x = 0.5 * x * (1.0 + jax.lax.erf(x / jnp.sqrt(2.0)))
    return x @ raw["w2"] + raw["b2"]


def _reference_forward_mixed(hidden_states, prep, num_classes):
    """Pure-JAX reference mirroring the kernel's bf16-weight mixed precision
    and folded one-pass LayerNorm."""
    x = hidden_states[:, 0, :].astype(jnp.bfloat16)
    h = jnp.dot(x, prep["w_pool"], preferred_element_type=jnp.float32)
    h = jnp.tanh(h + prep["b_pool"])
    h = jnp.dot(h.astype(jnp.bfloat16), prep["w1"],
                preferred_element_type=jnp.float32) + prep["b1"]
    mu = jnp.mean(h, axis=-1, keepdims=True)
    ex2 = jnp.mean(h * h, axis=-1, keepdims=True)
    inv_std = jax.lax.rsqrt(ex2 - mu * mu + 1e-5)
    h = (h - mu) * (inv_std * prep["gamma"]) + prep["beta"]
    h = 0.5 * h * (1.0 + jax.lax.erf(h / jnp.sqrt(2.0)))
    out = jnp.dot(h.astype(jnp.bfloat16), prep["w2"],
                  preferred_element_type=jnp.float32) + prep["b2"]
    return out[:, :num_classes]


if __name__ == "__main__":
    key = jax.random.PRNGKey(0)
    k_x, k_p = jax.random.split(key)

    batch, seq, hidden_dim, num_classes = 2, 8, 32, 10
    hidden_states = jax.random.normal(k_x, (batch, seq, hidden_dim), jnp.float32)
    raw_params = init_params(k_p, hidden_dim, num_classes)
    params = prepare_params(raw_params)

    logits = multilabel_head_forward(hidden_states, params,
                                     num_classes=num_classes)
    logits = jax.block_until_ready(logits)
    assert logits.shape == (batch, num_classes)

    # Tight check against a reference with the same bf16-weight precision.
    ref_mixed = _reference_forward_mixed(hidden_states, params, num_classes)
    assert jnp.allclose(logits, ref_mixed, atol=1e-2, rtol=1e-2), \
        float(jnp.max(jnp.abs(logits - ref_mixed)))

    # Loose check against the full-f32 PyTorch-equivalent reference
    # (bf16 weights introduce an expected ~1e-3 level difference).
    ref_f32 = _reference_forward_f32(hidden_states, raw_params)
    assert jnp.allclose(logits, ref_f32, atol=5e-2, rtol=5e-2), \
        float(jnp.max(jnp.abs(logits - ref_f32)))

    print("KERNEL_OK")
</pallas_src>

<mosaic_0001>
module attributes {stable_mosaic.version = 11 : i64} {
  func.func @_head_kernel(%arg0: i32, %arg1: memref<2x32xf32, #tpu.memory_space<vmem>>, %arg2: memref<32x32xbf16, #tpu.memory_space<vmem>>, %arg3: memref<1x32xf32, #tpu.memory_space<vmem>>, %arg4: memref<32x64xbf16, #tpu.memory_space<vmem>>, %arg5: memref<1x64xf32, #tpu.memory_space<vmem>>, %arg6: memref<1x64xf32, #tpu.memory_space<vmem>>, %arg7: memref<1x64xf32, #tpu.memory_space<vmem>>, %arg8: memref<64x128xbf16, #tpu.memory_space<vmem>>, %arg9: memref<1x128xf32, #tpu.memory_space<vmem>>, %arg10: memref<2x128xf32, #tpu.memory_space<vmem>>) attributes {dimension_semantics = [#tpu.dimension_semantics<parallel>], iteration_bounds = array<i64: 1>, scalar_prefetch = 0 : i64, scratch_operands = 0 : i64, tpu.core_type = #tpu.core_type<tc>, window_params = [{transform_indices = @transform_0, window_bounds = array<i64: 2, 32>}, {pipeline_mode = #tpu.pipeline_mode<synchronous>, transform_indices = @transform_1, window_bounds = array<i64: 32, 32>}, {pipeline_mode = #tpu.pipeline_mode<synchronous>, transform_indices = @transform_2, window_bounds = array<i64: 1, 32>}, {pipeline_mode = #tpu.pipeline_mode<synchronous>, transform_indices = @transform_3, window_bounds = array<i64: 32, 64>}, {pipeline_mode = #tpu.pipeline_mode<synchronous>, transform_indices = @transform_4, window_bounds = array<i64: 1, 64>}, {pipeline_mode = #tpu.pipeline_mode<synchronous>, transform_indices = @transform_5, window_bounds = array<i64: 1, 64>}, {pipeline_mode = #tpu.pipeline_mode<synchronous>, transform_indices = @transform_6, window_bounds = array<i64: 1, 64>}, {pipeline_mode = #tpu.pipeline_mode<synchronous>, transform_indices = @transform_7, window_bounds = array<i64: 64, 128>}, {pipeline_mode = #tpu.pipeline_mode<synchronous>, transform_indices = @transform_8, window_bounds = array<i64: 1, 128>}, {transform_indices = @transform_9, window_bounds = array<i64: 2, 128>}]} {
    %c0 = arith.constant 0 : index
    %c0_0 = arith.constant 0 : index
    %0 = vector.load %arg1[%c0, %c0_0] : memref<2x32xf32, #tpu.memory_space<vmem>>, vector<2x32xf32>
    %1 = arith.truncf %0 : vector<2x32xf32> to vector<2x32xbf16>
    %c0_1 = arith.constant 0 : index
    %c0_2 = arith.constant 0 : index
    %2 = vector.load %arg2[%c0_1, %c0_2] : memref<32x32xbf16, #tpu.memory_space<vmem>>, vector<32x32xbf16>
    %cst = arith.constant dense<0.000000e+00> : vector<2x32xf32>
    %3 = tpu.matmul %1, %2, %cst {dimension_numbers = #tpu.dot_dimension_numbers<[1], [0], [0], [1], [0, 0, 1, 1], [], []>} : vector<2x32xbf16>, vector<32x32xbf16>, vector<2x32xf32> -> vector<2x32xf32>
    %c0_3 = arith.constant 0 : index
    %c0_4 = arith.constant 0 : index
    %4 = vector.load %arg3[%c0_3, %c0_4] : memref<1x32xf32, #tpu.memory_space<vmem>>, vector<1x32xf32>
    %5 = vector.broadcast %4 : vector<1x32xf32> to vector<2x32xf32>
    %6 = arith.addf %3, %5 : vector<2x32xf32>
    %7 = math.tanh %6 : vector<2x32xf32>
    %8 = arith.truncf %7 : vector<2x32xf32> to vector<2x32xbf16>
    %c0_5 = arith.constant 0 : index
    %c0_6 = arith.constant 0 : index
    %9 = vector.load %arg4[%c0_5, %c0_6] : memref<32x64xbf16, #tpu.memory_space<vmem>>, vector<32x64xbf16>
    %cst_7 = arith.constant dense<0.000000e+00> : vector<2x64xf32>
    %10 = tpu.matmul %8, %9, %cst_7 {dimension_numbers = #tpu.dot_dimension_numbers<[1], [0], [0], [1], [0, 0, 1, 1], [], []>} : vector<2x32xbf16>, vector<32x64xbf16>, vector<2x64xf32> -> vector<2x64xf32>
    %c0_8 = arith.constant 0 : index
    %c0_9 = arith.constant 0 : index
    %11 = vector.load %arg5[%c0_8, %c0_9] : memref<1x64xf32, #tpu.memory_space<vmem>>, vector<1x64xf32>
    %12 = vector.broadcast %11 : vector<1x64xf32> to vector<2x64xf32>
    %13 = arith.addf %10, %12 : vector<2x64xf32>
    %cst_10 = arith.constant dense<0.000000e+00> : vector<2xf32>
    %14 = vector.multi_reduction <add>, %13, %cst_10 [1] : vector<2x64xf32> to vector<2xf32>
    %15 = vector.shape_cast %14 : vector<2xf32> to vector<2x1xf32>
    %cst_11 = arith.constant 1.562500e-02 : f32
    %16 = vector.broadcast %cst_11 : f32 to vector<2x1xf32>
    %17 = arith.mulf %15, %16 : vector<2x1xf32>
    %18 = arith.mulf %13, %13 : vector<2x64xf32>
    %cst_12 = arith.constant dense<0.000000e+00> : vector<2xf32>
    %19 = vector.multi_reduction <add>, %18, %cst_12 [1] : vector<2x64xf32> to vector<2xf32>
    %20 = vector.shape_cast %19 : vector<2xf32> to vector<2x1xf32>
    %cst_13 = arith.constant 1.562500e-02 : f32
    %21 = vector.broadcast %cst_13 : f32 to vector<2x1xf32>
    %22 = arith.mulf %20, %21 : vector<2x1xf32>
    %23 = arith.mulf %17, %17 : vector<2x1xf32>
    %24 = arith.subf %22, %23 : vector<2x1xf32>
    %cst_14 = arith.constant 9.99999974E-6 : f32
    %25 = vector.broadcast %cst_14 : f32 to vector<2x1xf32>
    %26 = arith.addf %24, %25 : vector<2x1xf32>
    %27 = math.rsqrt %26 : vector<2x1xf32>
    %28 = vector.broadcast %17 : vector<2x1xf32> to vector<2x64xf32>
    %29 = arith.subf %13, %28 : vector<2x64xf32>
    %c0_15 = arith.constant 0 : index
    %c0_16 = arith.constant 0 : index
    %30 = vector.load %arg6[%c0_15, %c0_16] : memref<1x64xf32, #tpu.memory_space<vmem>>, vector<1x64xf32>
    %31 = vector.broadcast %27 : vector<2x1xf32> to vector<2x64xf32>
    %32 = vector.broadcast %30 : vector<1x64xf32> to vector<2x64xf32>
    %33 = arith.mulf %31, %32 : vector<2x64xf32>
    %34 = arith.mulf %29, %33 : vector<2x64xf32>
    %c0_17 = arith.constant 0 : index
    %c0_18 = arith.constant 0 : index
    %35 = vector.load %arg7[%c0_17, %c0_18] : memref<1x64xf32, #tpu.memory_space<vmem>>, vector<1x64xf32>
    %36 = vector.broadcast %35 : vector<1x64xf32> to vector<2x64xf32>
    %37 = arith.addf %34, %36 : vector<2x64xf32>
    %cst_19 = arith.constant 5.000000e-01 : f32
    %38 = vector.broadcast %cst_19 : f32 to vector<2x64xf32>
    %39 = arith.mulf %38, %37 : vector<2x64xf32>
    %cst_20 = arith.constant 0.707106769 : f32
    %40 = vector.broadcast %cst_20 : f32 to vector<2x64xf32>
    %41 = arith.mulf %37, %40 : vector<2x64xf32>
    %42 = math.erf %41 : vector<2x64xf32>
    %cst_21 = arith.constant 1.000000e+00 : f32
    %43 = vector.broadcast %cst_21 : f32 to vector<2x64xf32>
    %44 = arith.addf %43, %42 : vector<2x64xf32>
    %45 = arith.mulf %39, %44 : vector<2x64xf32>
    %46 = arith.truncf %45 : vector<2x64xf32> to vector<2x64xbf16>
    %c0_22 = arith.constant 0 : index
    %c0_23 = arith.constant 0 : index
    %47 = vector.load %arg8[%c0_22, %c0_23] : memref<64x128xbf16, #tpu.memory_space<vmem>>, vector<64x128xbf16>
    %cst_24 = arith.constant dense<0.000000e+00> : vector<2x128xf32>
    %48 = tpu.matmul %46, %47, %cst_24 {dimension_numbers = #tpu.dot_dimension_numbers<[1], [0], [0], [1], [0, 0, 1, 1], [], []>} : vector<2x64xbf16>, vector<64x128xbf16>, vector<2x128xf32> -> vector<2x128xf32>
    %c0_25 = arith.constant 0 : index
    %c0_26 = arith.constant 0 : index
    %49 = vector.load %arg9[%c0_25, %c0_26] : memref<1x128xf32, #tpu.memory_space<vmem>>, vector<1x128xf32>
    %50 = vector.broadcast %49 : vector<1x128xf32> to vector<2x128xf32>
    %51 = arith.addf %48, %50 : vector<2x128xf32>
    %c0_27 = arith.constant 0 : index
    %c0_28 = arith.constant 0 : index
    %52 = vector.load %arg10[%c0_27, %c0_28] : memref<2x128xf32, #tpu.memory_space<vmem>>, vector<2x128xf32>
    tpu.vector_store %arg10[%c0_27, %c0_28], %51 {strides = array<i32>} : memref<2x128xf32, #tpu.memory_space<vmem>>, vector<2x128xf32>,
    return
  }
  func.func @transform_0(%arg0: i32) -> (i32, i32) {
    %c0_i32 = arith.constant 0 : i32
    %c0_i32_0 = arith.constant 0 : i32
    return %arg0, %c0_i32 : i32, i32
  }
  func.func @transform_1(%arg0: i32) -> (i32, i32) {
    %c0_i32 = arith.constant 0 : i32
    %c0_i32_0 = arith.constant 0 : i32
    %c0_i32_1 = arith.constant 0 : i32
    return %c0_i32, %c0_i32_0 : i32, i32
  }
  func.func @transform_2(%arg0: i32) -> (i32, i32) {
    %c0_i32 = arith.constant 0 : i32
    %c0_i32_0 = arith.constant 0 : i32
    %c0_i32_1 = arith.constant 0 : i32
    return %c0_i32, %c0_i32_0 : i32, i32
  }
  func.func @transform_3(%arg0: i32) -> (i32, i32) {
    %c0_i32 = arith.constant 0 : i32
    %c0_i32_0 = arith.constant 0 : i32
    %c0_i32_1 = arith.constant 0 : i32
    return %c0_i32, %c0_i32_0 : i32, i32
  }
  func.func @transform_4(%arg0: i32) -> (i32, i32) {
    %c0_i32 = arith.constant 0 : i32
    %c0_i32_0 = arith.constant 0 : i32
    %c0_i32_1 = arith.constant 0 : i32
    return %c0_i32, %c0_i32_0 : i32, i32
  }
  func.func @transform_5(%arg0: i32) -> (i32, i32) {
    %c0_i32 = arith.constant 0 : i32
    %c0_i32_0 = arith.constant 0 : i32
    %c0_i32_1 = arith.constant 0 : i32
    return %c0_i32, %c0_i32_0 : i32, i32
  }
  func.func @transform_6(%arg0: i32) -> (i32, i32) {
    %c0_i32 = arith.constant 0 : i32
    %c0_i32_0 = arith.constant 0 : i32
    %c0_i32_1 = arith.constant 0 : i32
    return %c0_i32, %c0_i32_0 : i32, i32
  }
  func.func @transform_7(%arg0: i32) -> (i32, i32) {
    %c0_i32 = arith.constant 0 : i32
    %c0_i32_0 = arith.constant 0 : i32
    %c0_i32_1 = arith.constant 0 : i32
    return %c0_i32, %c0_i32_0 : i32, i32
  }
  func.func @transform_8(%arg0: i32) -> (i32, i32) {
    %c0_i32 = arith.constant 0 : i32
    %c0_i32_0 = arith.constant 0 : i32
    %c0_i32_1 = arith.constant 0 : i32
    return %c0_i32, %c0_i32_0 : i32, i32
  }
  func.func @transform_9(%arg0: i32) -> (i32, i32) {
    %c0_i32 = arith.constant 0 : i32
    %c0_i32_0 = arith.constant 0 : i32
    return %arg0, %c0_i32 : i32, i32
  }
}

</mosaic_0001>

<llo_original>
// kernel: multilabel_head_forward.1
$region0: #{multilabel_head_forward.1}
  #allocation0 [shape = 'u32[]', space=smem, size = 0x4, offset = 0x4, fixed_abs, tag = 'smem constant byte address 0x4 - core index']
  #allocation1 [shape = 'u32[144,128]{1,0:T(1,128)}', space=vmem, size = 0x12000, scoped, tag = 'internal scratch']
  %s0 = inlined_call_operand.vmem [shape: f32[2,32], index: 0, kind: input, shape index: {}]
  %s1 = inlined_call_operand.vmem [shape: bf16[32,32], index: 1, kind: input, shape index: {}]
  %s2 = inlined_call_operand.vmem [shape: f32[1,32], index: 2, kind: input, shape index: {}]
  %s3 = inlined_call_operand.hbm [shape: bf16[32,64], index: 3, kind: input, shape index: {}]
  %s4 = inlined_call_operand.vmem [shape: f32[1,64], index: 4, kind: input, shape index: {}]
  %s5 = inlined_call_operand.hbm [shape: f32[1,64], index: 5, kind: input, shape index: {}]
  %s6 = inlined_call_operand.hbm [shape: f32[1,64], index: 6, kind: input, shape index: {}]
  %s7 = inlined_call_operand.hbm [shape: bf16[64,128], index: 7, kind: input, shape index: {}]
  %s8 = inlined_call_operand.hbm [shape: f32[1,128], index: 8, kind: input, shape index: {}]
  %s9 = inlined_call_operand.hbm [shape: f32[2,128], index: 9, kind: output, shape index: {}]
  %s10 = sld [smem:[#allocation0]]
  $region66: #{multilabel_head_forward.1} parent=0
    _
  %s12 = ssub.s32 1, %s10
  %s13 = scalar_select 0, %s12, %s10
  $region1: #{multilabel_head_forward.1} parent=0
    #allocation2 [shape = 'u8[8192]{0}', space=vmem, size = 0x2000, scoped, tag = 'input window, operand 3, single buffered']
    #allocation3 [shape = 's32[1]{0}', space=sflag, size = 0x4, scoped, tag = 'scoped memory for multilabel_head_forward.1']
    #allocation4 [shape = 's32[1]{0}', space=sflag, size = 0x4, scoped, tag = 'scoped memory for multilabel_head_forward.1']
    #allocation5 [shape = 'u8[512]{0}', space=vmem, size = 0x400, scoped, tag = 'input window, operand 5, single buffered']
    #allocation6 [shape = 's32[1]{0}', space=sflag, size = 0x4, scoped, tag = 'scoped memory for multilabel_head_forward.1']
    #allocation7 [shape = 'u8[512]{0}', space=vmem, size = 0x400, scoped, tag = 'input window, operand 6, single buffered']
    #allocation8 [shape = 'u8[16384]{0}', space=vmem, size = 0x4000, scoped, tag = 'input window, operand 7, single buffered']
    #allocation9 [shape = 's32[1]{0}', space=sflag, size = 0x4, scoped, tag = 'scoped memory for multilabel_head_forward.1']
    #allocation10 [shape = 'u8[512]{0}', space=vmem, size = 0x400, scoped, tag = 'input window, operand 8, single buffered']
    #allocation11 [shape = 'u8[1024]{0}', space=vmem, size = 0x400, scoped, tag = 'output window, operand 0, single buffered']
    %14 = vsyncpa [#allocation3], 0
    %15 = vsyncpa [#allocation6], 0
    %16 = vsyncpa [#allocation9], 0
    %17 = vsyncpa [#allocation4], 0
    // Predicated region
    $region2: #{multilabel_head_forward.1} parent=1 // pred_check
      _
    $region3: #{multilabel_head_forward.1} parent=1 // pred_check_branch
      %19 = sbr.rel (0) target = $region5
    $region4: #{multilabel_head_forward.1} parent=1 // pred_region
      _
    $region5: #{multilabel_head_forward.1} parent=1 // pred_fallthru
      _
    // Predicated region
    $region6: #{multilabel_head_forward.1} parent=1 // pred_check
      _
    $region7: #{multilabel_head_forward.1} parent=1 // pred_check_branch
      %21 = sbr.rel (0) target = $region9
    $region8: #{multilabel_head_forward.1} parent=1 // pred_region
      _
    $region9: #{multilabel_head_forward.1} parent=1 // pred_fallthru
      _
    // Predicated region
    $region10: #{multilabel_head_forward.1} parent=1 // pred_check
      _
    $region11: #{multilabel_head_forward.1} parent=1 // pred_check_branch
      %23 = sbr.rel (0) target = $region13
    $region12: #{multilabel_head_forward.1} parent=1 // pred_region
      _
    $region13: #{multilabel_head_forward.1} parent=1 // pred_fallthru
      _
    // Predicated region
    $region14: #{multilabel_head_forward.1} parent=1 // pred_check
      _
    $region15: #{multilabel_head_forward.1} parent=1 // pred_check_branch
      %25 = sbr.rel (0) target = $region17
    $region16: #{multilabel_head_forward.1} parent=1 // pred_region
      %s27 = ssub.s32 256, 256
      %28 = vsyncadd [#allocation3], %s27
      %s29 = sshll.u32 [#allocation2], 4
      %s30 = int_to_ptr.vmem [resolvable:$true] %s29
      %35 = dma.hbm_to_vmem [thread:$0]  %s3, 256, %s30, [#allocation3], 64, 64, 4
    $region17: #{multilabel_head_forward.1} parent=1 // pred_fallthru
      _
    // Predicated region
    $region18: #{multilabel_head_forward.1} parent=1 // pred_check
      _
    $region19: #{multilabel_head_forward.1} parent=1 // pred_check_branch
      %37 = sbr.rel (0) target = $region21
    $region20: #{multilabel_head_forward.1} parent=1 // pred_region
      _
    $region21: #{multilabel_head_forward.1} parent=1 // pred_fallthru
      _
    // Predicated region
    $region22: #{multilabel_head_forward.1} parent=1 // pred_check
      _
    $region23: #{multilabel_head_forward.1} parent=1 // pred_check_branch
      %39 = sbr.rel (0) target = $region25
    $region24: #{multilabel_head_forward.1} parent=1 // pred_region
      %s41 = ssub.s32 16, 16
      %42 = vsyncadd [#allocation6], %s41
      %s44 = sshll.u32 [#allocation5], 4
      %s45 = int_to_ptr.vmem [resolvable:$true] %s44
      %47 = dma.hbm_to_vmem [thread:$0]  %s5, 16, %s45, [#allocation6]
    $region25: #{multilabel_head_forward.1} parent=1 // pred_fallthru
      _
    // Predicated region
    $region26: #{multilabel_head_forward.1} parent=1 // pred_check
      _
    $region27: #{multilabel_head_forward.1} parent=1 // pred_check_branch
      %49 = sbr.rel (0) target = $region29
    $region28: #{multilabel_head_forward.1} parent=1 // pred_region
      %s51 = ssub.s32 16, 16
      %52 = vsyncadd [#allocation6], %s51
      %s54 = sshll.u32 [#allocation7], 4
      %s55 = int_to_ptr.vmem [resolvable:$true] %s54
      %57 = dma.hbm_to_vmem [thread:$0]  %s6, 16, %s55, [#allocation6]
    $region29: #{multilabel_head_forward.1} parent=1 // pred_fallthru
      _
    // Predicated region
    $region30: #{multilabel_head_forward.1} parent=1 // pred_check
      _
    $region31: #{multilabel_head_forward.1} parent=1 // pred_check_branch
      %59 = sbr.rel (0) target = $region33
    $region32: #{multilabel_head_forward.1} parent=1 // pred_region
      %s61 = ssub.s32 512, 512
      %62 = vsyncadd [#allocation9], %s61
      %s63 = sshll.u32 [#allocation8], 4
      %s64 = int_to_ptr.vmem [resolvable:$true] %s63
      %69 = dma.hbm_to_vmem [thread:$0]  %s7, 512, %s64, [#allocation9], 64, 64, 4
    $region33: #{multilabel_head_forward.1} parent=1 // pred_fallthru
      _
    // Predicated region
    $region34: #{multilabel_head_forward.1} parent=1 // pred_check
      _
    $region35: #{multilabel_head_forward.1} parent=1 // pred_check_branch
      %71 = sbr.rel (0) target = $region37
    $region36: #{multilabel_head_forward.1} parent=1 // pred_region
      %s73 = ssub.s32 16, 16
      %74 = vsyncadd [#allocation9], %s73
      %s76 = sshll.u32 [#allocation10], 4
      %s77 = int_to_ptr.vmem [resolvable:$true] %s76
      %79 = dma.hbm_to_vmem [thread:$0]  %s8, 16, %s77, [#allocation9]
    $region37: #{multilabel_head_forward.1} parent=1 // pred_fallthru
      _
    // Predicated region
    $region38: #{multilabel_head_forward.1} parent=1 // pred_check
      _
    $region39: #{multilabel_head_forward.1} parent=1 // pred_check_branch
      %81 = sbr.rel (0) target = $region41
    $region40: #{multilabel_head_forward.1} parent=1 // pred_region
      %82 = dma.done [#allocation3], 256
    $region41: #{multilabel_head_forward.1} parent=1 // pred_fallthru
      _
    // Predicated region
    $region42: #{multilabel_head_forward.1} parent=1 // pred_check
      _
    $region43: #{multilabel_head_forward.1} parent=1 // pred_check_branch
      %84 = sbr.rel (0) target = $region45
    $region44: #{multilabel_head_forward.1} parent=1 // pred_region
      %85 = dma.done [#allocation6], 16
    $region45: #{multilabel_head_forward.1} parent=1 // pred_fallthru
      _
    // Predicated region
    $region46: #{multilabel_head_forward.1} parent=1 // pred_check
      _
    $region47: #{multilabel_head_forward.1} parent=1 // pred_check_branch
      %87 = sbr.rel (0) target = $region49
    $region48: #{multilabel_head_forward.1} parent=1 // pred_region
      %88 = dma.done [#allocation6], 16
    $region49: #{multilabel_head_forward.1} parent=1 // pred_fallthru
      _
    // Predicated region
    $region50: #{multilabel_head_forward.1} parent=1 // pred_check
      _
    $region51: #{multilabel_head_forward.1} parent=1 // pred_check_branch
      %90 = sbr.rel (0) target = $region53
    $region52: #{multilabel_head_forward.1} parent=1 // pred_region
      %91 = dma.done [#allocation9], 512
    $region53: #{multilabel_head_forward.1} parent=1 // pred_fallthru
      _
    // Predicated region
    $region54: #{multilabel_head_forward.1} parent=1 // pred_check
      _
    $region55: #{multilabel_head_forward.1} parent=1 // pred_check_branch
      %93 = sbr.rel (0) target = $region57
    $region56: #{multilabel_head_forward.1} parent=1 // pred_region
      %94 = dma.done [#allocation9], 16
    $region57: #{multilabel_head_forward.1} parent=1 // pred_fallthru
      _
    %v96 = vld [vmem:[%s0] sm:$0x3]
    %v97 = vpack.c.bf16 %v96, %v96
    %v98 = vld [vmem:[%s1] sm:$0xf]
    %v99 = vld [vmem:[%s1 + $0x4] sm:$0xf]
    %v100 = vld [vmem:[%s1 + $0x8] sm:$0xf]
    %v101 = vld [vmem:[%s1 + $0xc] sm:$0xf]
    %v102 = vld [vmem:[%s2] sm:$0x1]
    %v104 = vlaneseq
    %v105 = vshrl.u32 %v104, 7
    %v106 = vsub.s32 0, %v105
    %v107 = vrot.slane %v102, %v106
    %v113 = vunpack.c.l.b16 %v98
    %v114 = vunpack.c.l.b16 %v99
    %v115 = vunpack.c.l.b16 %v100
    %v116 = vunpack.c.l.b16 %v101
    %v117 = vpack.c.b16 %v114, %v113
    %v118 = vpack.c.b16 %v116, %v115
    %vm121 = vcmask 261120
    %v123 = vsel %vm121, %v97, 0
    %125 = vmatprep.subr.bf16.mxu0 0
    %126 = vmatpush1.bf16.msra.mxu0 0
    %127 = vmatprep.subr.bf16.mxu0 0
    %128 = vmatpush1.bf16.msra.mxu0 0
    %129 = vmatprep.subr.bf16.mxu0 0
    %130 = vmatpush1.bf16.msra.mxu0 0
    %131 = vmatprep.subr.bf16.mxu0 0
    %132 = vmatpush1.bf16.msra.mxu0 0
    %133 = vmatprep.subr.bf16.mxu0 0
    %134 = vmatpush1.bf16.msra.mxu0 0
    %135 = vmatprep.subr.bf16.mxu0 0
    %136 = vmatpush1.bf16.msra.mxu0 0
    %137 = vmatprep.subr.bf16.mxu0 0
    %138 = vmatpush1.bf16.msra.mxu0 %v118
    %139 = vmatprep.subr.bf16.mxu0 0
    %140 = vmatpush1.bf16.msra.mxu0 %v117
    %141 = vmatprep.subr.bf16.mxu0 0
    %142 = vmatpush2.bf16.msra.mxu0 0
    %143 = vmatprep.subr.bf16.mxu0 0
    %144 = vmatpush2.bf16.msra.mxu0 0
    %145 = vmatprep.subr.bf16.mxu0 0
    %146 = vmatpush2.bf16.msra.mxu0 0
    %147 = vmatprep.subr.bf16.mxu0 0
    %148 = vmatpush2.bf16.msra.mxu0 0
    %149 = vmatprep.subr.bf16.mxu0 0
    %150 = vmatpush2.bf16.msra.mxu0 0
    %151 = vmatprep.subr.bf16.mxu0 0
    %152 = vmatpush2.bf16.msra.mxu0 0
    %153 = vmatprep.subr.bf16.mxu0 0
    %154 = vmatpush2.bf16.msra.mxu0 0
    %155 = vmatprep.subr.bf16.mxu0 0
    %156 = vmatpush2.bf16.msra.mxu0 0
    %157 = vmatprep.mubr.bf16.mxu0 0
    %158 = vmatmul.mubr.bf16.gmra.mxu0 %v123
    %v159 = vpop.f32.mrf.mxu0
    %v160 = vadd.f32 %v107, %v159
    %v161 = vpop.f32.mrf.mxu0
    %v162 = vpop.f32.mrf.mxu0
    %v163 = vpop.f32.mrf.mxu0
    %164 = vdwg.mxu0
    %v165 = vtanh.pop %v160
    %v166 = vpack.c.bf16 %v165, %v165
    %v167 = vld [vmem:[#allocation2] sm:$0xf]
    %v168 = vld [vmem:[#allocation2 + $0x4] sm:$0xf]
    %v169 = vld [vmem:[#allocation2 + $0x8] sm:$0xf]
    %v170 = vld [vmem:[#allocation2 + $0xc] sm:$0xf]
    %v171 = vld [vmem:[%s4] sm:$0x1]
    %v173 = vlaneseq
    %v174 = vshrl.u32 %v173, 7
    %v175 = vsub.s32 0, %v174
    %v176 = vrot.slane %v171, %v175
    %v182 = vunpack.c.l.b16 %v167
    %v183 = vunpack.c.l.b16 %v168
    %v184 = vunpack.c.l.b16 %v169
    %v185 = vunpack.c.l.b16 %v170
    %v186 = vpack.c.b16 %v183, %v182
    %v187 = vpack.c.b16 %v185, %v184
    %v191 = vsel %vm121, %v166, 0
    %193 = vmatprep.subr.bf16.mxu0 0
    %194 = vmatpush1.bf16.msra.mxu0 0
    %195 = vmatprep.subr.bf16.mxu0 0
    %196 = vmatpush1.bf16.msra.mxu0 0
    %197 = vmatprep.subr.bf16.mxu0 0
    %198 = vmatpush1.bf16.msra.mxu0 0
    %199 = vmatprep.subr.bf16.mxu0 0
    %200 = vmatpush1.bf16.msra.mxu0 0
    %201 = vmatprep.subr.bf16.mxu0 0
    %202 = vmatpush1.bf16.msra.mxu0 0
    %203 = vmatprep.subr.bf16.mxu0 0
    %204 = vmatpush1.bf16.msra.mxu0 0
    %205 = vmatprep.subr.bf16.mxu0 0
    %206 = vmatpush1.bf16.msra.mxu0 %v187
    %207 = vmatprep.subr.bf16.mxu0 0
    %208 = vmatpush1.bf16.msra.mxu0 %v186
    %209 = vmatprep.subr.bf16.mxu0 0
    %210 = vmatpush2.bf16.msra.mxu0 0
    %211 = vmatprep.subr.bf16.mxu0 0
    %212 = vmatpush2.bf16.msra.mxu0 0
    %213 = vmatprep.subr.bf16.mxu0 0
    %214 = vmatpush2.bf16.msra.mxu0 0
    %215 = vmatprep.subr.bf16.mxu0 0
    %216 = vmatpush2.bf16.msra.mxu0 0
    %217 = vmatprep.subr.bf16.mxu0 0
    %218 = vmatpush2.bf16.msra.mxu0 0
    %219 = vmatprep.subr.bf16.mxu0 0
    %220 = vmatpush2.bf16.msra.mxu0 0
    %221 = vmatprep.subr.bf16.mxu0 0
    %222 = vmatpush2.bf16.msra.mxu0 0
    %223 = vmatprep.subr.bf16.mxu0 0
    %224 = vmatpush2.bf16.msra.mxu0 0
    %225 = vmatprep.mubr.bf16.mxu0 0
    %226 = vmatmul.mubr.bf16.gmra.mxu0 %v191
    %v227 = vpop.f32.mrf.mxu0
    %v228 = vadd.f32 %v176, %v227
    %v229 = vpop.f32.mrf.mxu0
    %v230 = vpop.f32.mrf.mxu0
    %v231 = vpop.f32.mrf.mxu0
    %232 = vdwg.mxu0
    %vm233 = vcmask 517120
    %v234 = vsel %vm233, %v228, 0.0
    %235 = vadd.xlane.f32.xlu0 %v234
    %v236 = vpop.xlane.xlu0 %235
    %v237 = vmul.f32 %v236, 0.015625
    %v238 = vmul.f32 %v228, %v228
    %v239 = vsel %vm233, %v238, 0.0
    %240 = vadd.xlane.f32.xlu0 %v239
    %v241 = vpop.xlane.xlu0 %240
    %v242 = vmul.f32 %v241, 0.015625
    %v243 = vmul.f32 %v237, %v237
    %v244 = vsub.f32 %v242, %v243
    %v245 = vadd.f32 %v244, 1e-05
    %v246 = vrsqrt.pop %v245
    %v247 = vsub.f32 %v228, %v237
    %v248 = vld [vmem:[#allocation5] sm:$0x1]
    %v250 = vlaneseq
    %v251 = vshrl.u32 %v250, 7
    %v252 = vsub.s32 0, %v251
    %v253 = vrot.slane %v248, %v252
    %v255 = vmul.f32 %v246, %v253
    %v256 = vmul.f32 %v247, %v255
    %v257 = vld [vmem:[#allocation7] sm:$0x1]
    %v259 = vlaneseq
    %v260 = vshrl.u32 %v259, 7
    %v261 = vsub.s32 0, %v260
    %v262 = vrot.slane %v257, %v261
    %v264 = vadd.f32 %v256, %v262
    %v265 = vmul.f32 %v264, 0.5
    %v266 = vmul.f32 %v264, 0.70710677
    %v267 = verf.f32.pop %v266
    %v268 = vadd.f32 %v267, 1.0
    %v269 = vmul.f32 %v265, %v268
    %v270 = vpack.c.bf16 %v269, %v269
    %v271 = vld [vmem:[#allocation8] sm:$0xf]
    %v272 = vld [vmem:[#allocation8 + $0x4] sm:$0xf]
    %v273 = vld [vmem:[#allocation8 + $0x8] sm:$0xf]
    %v274 = vld [vmem:[#allocation8 + $0xc] sm:$0xf]
    %v275 = vld [vmem:[#allocation8 + $0x10] sm:$0xf]
    %v276 = vld [vmem:[#allocation8 + $0x14] sm:$0xf]
    %v277 = vld [vmem:[#allocation8 + $0x18] sm:$0xf]
    %v278 = vld [vmem:[#allocation8 + $0x1c] sm:$0xf]
    %v279 = vld [vmem:[#allocation10] sm:$0x1]
    %v281 = vlaneseq
    %v282 = vshrl.u32 %v281, 7
    %v283 = vsub.s32 0, %v282
    %v284 = vrot.slane %v279, %v283
    %v294 = vunpack.c.l.b16 %v271
    %v295 = vunpack.c.l.b16 %v272
    %v296 = vunpack.c.l.b16 %v273
    %v297 = vunpack.c.l.b16 %v274
    %v298 = vunpack.c.l.b16 %v275
    %v299 = vunpack.c.l.b16 %v276
    %v300 = vunpack.c.l.b16 %v277
    %v301 = vunpack.c.l.b16 %v278
    %v302 = vpack.c.b16 %v295, %v294
    %v303 = vpack.c.b16 %v297, %v296
    %v304 = vpack.c.b16 %v299, %v298
    %v305 = vpack.c.b16 %v301, %v300
    %vm310 = vcmask 523264
    %v312 = vsel %vm310, %v270, 0
    %314 = vmatprep.subr.bf16.mxu0 0
    %315 = vmatpush1.bf16.msra.mxu0 0
    %316 = vmatprep.subr.bf16.mxu0 0
    %317 = vmatpush1.bf16.msra.mxu0 0
    %318 = vmatprep.subr.bf16.mxu0 0
    %319 = vmatpush1.bf16.msra.mxu0 0
    %320 = vmatprep.subr.bf16.mxu0 0
    %321 = vmatpush1.bf16.msra.mxu0 0
    %322 = vmatprep.subr.bf16.mxu0 0
    %323 = vmatpush1.bf16.msra.mxu0 %v305
    %324 = vmatprep.subr.bf16.mxu0 0
    %325 = vmatpush1.bf16.msra.mxu0 %v304
    %326 = vmatprep.subr.bf16.mxu0 0
    %327 = vmatpush1.bf16.msra.mxu0 %v303
    %328 = vmatprep.subr.bf16.mxu0 0
    %329 = vmatpush1.bf16.msra.mxu0 %v302
    %330 = vmatprep.subr.bf16.mxu0 0
    %331 = vmatpush2.bf16.msra.mxu0 0
    %332 = vmatprep.subr.bf16.mxu0 0
    %333 = vmatpush2.bf16.msra.mxu0 0
    %334 = vmatprep.subr.bf16.mxu0 0
    %335 = vmatpush2.bf16.msra.mxu0 0
    %336 = vmatprep.subr.bf16.mxu0 0
    %337 = vmatpush2.bf16.msra.mxu0 0
    %338 = vmatprep.subr.bf16.mxu0 0
    %339 = vmatpush2.bf16.msra.mxu0 0
    %340 = vmatprep.subr.bf16.mxu0 0
    %341 = vmatpush2.bf16.msra.mxu0 0
    %342 = vmatprep.subr.bf16.mxu0 0
    %343 = vmatpush2.bf16.msra.mxu0 0
    %344 = vmatprep.subr.bf16.mxu0 0
    %345 = vmatpush2.bf16.msra.mxu0 0
    %346 = vmatprep.mubr.bf16.mxu0 0
    %347 = vmatmul.mubr.bf16.gmra.mxu0 %v312
    %v348 = vpop.f32.mrf.mxu0
    %v349 = vadd.f32 %v284, %v348
    %v350 = vpop.f32.mrf.mxu0
    %v351 = vpop.f32.mrf.mxu0
    %v352 = vpop.f32.mrf.mxu0
    %353 = vdwg.mxu0
    %354 = vst [vmem:[#allocation11] sm:$0x3] %v349
    // Predicated region
    $region58: #{multilabel_head_forward.1} parent=1 // pred_check
      _
    $region59: #{multilabel_head_forward.1} parent=1 // pred_check_branch
      %356 = sbr.rel (0) target = $region61
    $region60: #{multilabel_head_forward.1} parent=1 // pred_region
      %s358 = ssub.s32 32, 32
      %359 = vsyncadd [#allocation4], %s358
      %s361 = sshll.u32 [#allocation11], 4
      %s362 = int_to_ptr.vmem [resolvable:$true] %s361
      %364 = dma.vmem_to_hbm [thread:$0]  %s362, 32, %s9, [#allocation4]
    $region61: #{multilabel_head_forward.1} parent=1 // pred_fallthru
      _
    // Predicated region
    $region62: #{multilabel_head_forward.1} parent=1 // pred_check
      _
    $region63: #{multilabel_head_forward.1} parent=1 // pred_check_branch
      %366 = sbr.rel (0) target = $region65
    $region64: #{multilabel_head_forward.1} parent=1 // pred_region
      %367 = dma.done [#allocation4], 32
    $region65: #{multilabel_head_forward.1} parent=1 // pred_fallthru
      _
    %368 = vsyncpa [#allocation3], 1
    %369 = vsyncpa [#allocation6], 1
    %370 = vsyncpa [#allocation9], 1
    %371 = vsyncpa [#allocation4], 1

</llo_original>
